<compile_context>
chip_gen: v6e
topology: v6e:2x2x1
jax: 0.10.0
libtpu: 0.0.40
codegen_flags: <defaults>
</compile_context>

<pallas_src>
import functools

import numpy as np
import jax
import jax.numpy as jnp
from jax.experimental import pallas as pl
from jax.experimental.pallas import tpu as pltpu


def _round_up(n, m):
    return ((n + m - 1) // m) * m


def _physical_vmem_bytes():
    """Best-effort per-core VMEM query; falls back to the tightest real chip (v7x)."""
    try:
        info = pltpu.get_tpu_info()
        for attr in ("vmem_capacity_bytes", "vmem_bytes", "vmem_size_bytes"):
            v = getattr(info, attr, None)
            if v:
                return int(v)
    except Exception:
        pass
    return 64 << 20


def _build_pool_upsample_operators(H, W, Hp, Wp, winsize, stride):
    """Dense bf16 avg-pool (HW, Np_pad) and nearest-upsample (Np_pad, HW) operators.

    Np = Hp*Wp is padded to a multiple of 128 so intermediates carrying the
    pooled axis on lanes are full, unmasked vreg tiles.  Padded pool columns of
    P and the matching rows of U are all-zero, so results are unaffected.
    1/winsize^2 (winsize a power of two) and one-hot values are exact in bf16.
    """
    HW = H * W
    Np = Hp * Wp
    Np_pad = _round_up(Np, 128)

    hh = (np.arange(HW) // W)[:, None]            # (HW, 1)
    ww = (np.arange(HW) % W)[:, None]
    ph = (np.arange(Np) // Wp)[None, :]           # (1, Np)
    pw = (np.arange(Np) % Wp)[None, :]
    in_h = (hh >= ph * stride) & (hh < ph * stride + winsize)
    in_w = (ww >= pw * stride) & (ww < pw * stride + winsize)
    P = np.zeros((HW, Np_pad), np.float32)
    P[:, :Np] = (in_h & in_w).astype(np.float32) / float(winsize * winsize)

    # PyTorch F.interpolate(..., mode='nearest'): src = floor(dst * in / out).
    row_src = (np.arange(H) * Hp) // H            # (H,)
    col_src = (np.arange(W) * Wp) // W            # (W,)
    pix_src = (row_src[:, None] * Wp + col_src[None, :]).reshape(-1)   # (HW,)
    U = np.zeros((Np_pad, HW), np.float32)
    U[pix_src, np.arange(HW)] = 1.0

    return jnp.asarray(P, jnp.bfloat16), jnp.asarray(U, jnp.bfloat16)


def _lca_kernel(x_ref, p_ref, w1_ref, w2_ref, u_ref, o_ref):
    """One grid step: rows = bblk*C image-channel rows, lane-dense on H*W.

    x_ref : (rows, HW)      input rows (one per image-channel), f32
    p_ref : (HW, Np_pad)    avg-pool operator, bf16
    w1_ref: (rows, rows)    block-diagonal first 1x1 conv weight, f32
    w2_ref: (rows, rows)    block-diagonal second 1x1 conv weight, f32
    u_ref : (Np_pad, HW)    nearest-upsample operator (one-hot rows), bf16
    o_ref : (rows, HW)
    """
    x2 = x_ref[...]
    # Overlapping average pool for every row at once (bf16 operands, f32 accum, MXU).
    pooled = jnp.dot(x2.astype(jnp.bfloat16), p_ref[...],
                     preferred_element_type=jnp.float32)          # (rows, Np_pad)
    # Block-diagonal 1x1-conv MLP: one matmul per layer for all images in block.
    h = jnp.maximum(jnp.dot(w1_ref[...], pooled,
                            preferred_element_type=jnp.float32), 0.0)
    y = jnp.dot(w2_ref[...], h, preferred_element_type=jnp.float32)
    gate_small = jnp.clip(y + 3.0, 0.0, 6.0) * (1.0 / 6.0)        # hard-sigmoid
    # Nearest upsample via one-hot matmul -> lane-dense gate map, one full-block store.
    gate_full = jnp.dot(gate_small.astype(jnp.bfloat16), u_ref[...],
                        preferred_element_type=jnp.float32)
    o_ref[...] = (x2 * gate_full).astype(o_ref.dtype)


def _pick_bblk(B, C, HW, itemsize, max_block_bytes):
    """Largest legal divisor of B, preferring (grid >= 2, bblk*C >= 128, big rows)."""
    legal = [d for d in range(1, B + 1)
             if B % d == 0 and ((d * C) % 8 == 0 or d == B)]
    fits = [d for d in legal if d * C * HW * itemsize <= max_block_bytes]
    cands = fits if fits else [min(legal)]

    def score(d):
        rows, steps = d * C, B // d
        return (steps >= 2, rows >= 128, rows)

    return max(cands, key=score)


def locality_channel_attention(x_nchw, w1, w2, *, winsize=8, max_block_bytes=None):
    """x_nchw: (B, C, H, W); w1, w2: (C, C, 1, 1) conv1x1 weights (no bias)."""
    B, C, H, W = x_nchw.shape
    assert winsize % 2 == 0 and winsize >= 2, "winsize must be even"
    stride = winsize // 2
    assert H >= winsize and W >= winsize, "spatial dims must cover one pool window"
    Hp = (H - winsize) // stride + 1
    Wp = (W - winsize) // stride + 1
    HW = H * W

    phys_vmem = _physical_vmem_bytes()
    if max_block_bytes is None:
        # Generation-aware block budget: smaller under v7x's 64 MiB, bigger on 128 MiB chips.
        max_block_bytes = (4 << 20) if phys_vmem <= (64 << 20) else (8 << 20)

    itemsize = x_nchw.dtype.itemsize
    bblk = _pick_bblk(B, C, HW, itemsize, max_block_bytes)
    rows = bblk * C
    grid = (B // bblk,)

    # Free contiguous reshape (no NCHW<->NHWC transposes, no extra HBM pass).
    x2 = x_nchw.reshape(B * C, HW)
    # Block-diagonal 1x1-conv weights: one (rows, rows) matmul per MLP layer.
    eye = jnp.eye(bblk, dtype=x_nchw.dtype)
    w1_bd = jnp.kron(eye, w1.reshape(C, C).astype(x_nchw.dtype))
    w2_bd = jnp.kron(eye, w2.reshape(C, C).astype(x_nchw.dtype))
    pool_mat, up_mat = _build_pool_upsample_operators(H, W, Hp, Wp, winsize, stride)
    np_pad = pool_mat.shape[1]

    # VMEM budget: 2x double-buffered in/out blocks + double-buffered constants
    # + in-kernel temporaries (bf16 x copy, f32 gate_full, pooled/h/y).
    in_block = rows * HW * itemsize
    const_bytes = (pool_mat.size + up_mat.size) * 2 + (w1_bd.size + w2_bd.size) * 4
    temp_bytes = in_block // 2 + in_block + 4 * rows * np_pad * 4
    vmem_need = 4 * in_block + 2 * const_bytes + temp_bytes
    vmem_limit = int(max(min(vmem_need + (8 << 20), phys_vmem - (8 << 20)), 32 << 20))

    out2 = pl.pallas_call(
        _lca_kernel,
        out_shape=jax.ShapeDtypeStruct((B * C, HW), x_nchw.dtype),
        grid=grid,
        in_specs=[
            pl.BlockSpec((rows, HW), lambda g: (g, 0)),
            pl.BlockSpec((HW, np_pad), lambda g: (0, 0)),
            pl.BlockSpec((rows, rows), lambda g: (0, 0)),
            pl.BlockSpec((rows, rows), lambda g: (0, 0)),
            pl.BlockSpec((np_pad, HW), lambda g: (0, 0)),
        ],
        out_specs=pl.BlockSpec((rows, HW), lambda g: (g, 0)),
        input_output_aliases={0: 0},   # donate x2's HBM buffer to the output
        compiler_params=pltpu.CompilerParams(
            dimension_semantics=("parallel",),
            vmem_limit_bytes=vmem_limit),
    )(x2, pool_mat, w1_bd, w2_bd, up_mat)

    return out2.reshape(B, C, H, W)


def _reference(x_nchw, w1, w2, *, winsize=8):
    """Pure-JAX (f32) reference of the PyTorch forward (NCHW)."""
    B, C, H, W = x_nchw.shape
    stride = winsize // 2
    Hp = (H - winsize) // stride + 1
    Wp = (W - winsize) // stride + 1
    pooled = jnp.stack([
        jnp.stack([
            jnp.mean(
                x_nchw[:, :, ph * stride:ph * stride + winsize,
                       pw * stride:pw * stride + winsize],
                axis=(2, 3))
            for pw in range(Wp)], axis=-1)
        for ph in range(Hp)], axis=-2)                        # (B, C, Hp, Wp)
    w1m = w1.reshape(C, C)
    w2m = w2.reshape(C, C)
    y = jnp.einsum('oc,bchw->bohw', w1m, pooled)
    y = jnp.maximum(y, 0.0)
    y = jnp.einsum('oc,bchw->bohw', w2m, y)
    y = jnp.clip(y + 3.0, 0.0, 6.0) / 6.0
    row_idx = np.array([i * Hp // H for i in range(H)])
    col_idx = np.array([j * Wp // W for j in range(W)])
    y_up = y[:, :, row_idx, :][:, :, :, col_idx]
    return x_nchw * y_up


if __name__ == "__main__":
    key = jax.random.PRNGKey(0)

    configs = [
        dict(B=2, C=32, H=16, W=16, winsize=8),
        dict(B=1, C=32, H=32, W=32, winsize=16),   # semantic branch uses winsize=16
        dict(B=4, C=32, H=16, W=16, winsize=8),    # exercises bblk>1 block-diag path
    ]
    for cfg in configs:
        B, C, H, W, winsize = cfg["B"], cfg["C"], cfg["H"], cfg["W"], cfg["winsize"]
        k1, k2, k3, key = jax.random.split(key, 4)
        x = jax.random.normal(k1, (B, C, H, W), dtype=jnp.float32)
        w1 = jax.random.normal(k2, (C, C, 1, 1), dtype=jnp.float32) * 0.1
        w2 = jax.random.normal(k3, (C, C, 1, 1), dtype=jnp.float32) * 0.1

        # Reference first: the kernel may donate x's buffer via input_output_aliases.
        ref = _reference(x, w1, w2, winsize=winsize)

        fn = jax.jit(functools.partial(locality_channel_attention, winsize=winsize))
        out = jax.block_until_ready(fn(x, w1, w2))

        # bf16 operator matmuls introduce ~2^-9 relative gate rounding.
        np.testing.assert_allclose(np.asarray(out), np.asarray(ref),
                                   rtol=1e-2, atol=1e-2)

    print("KERNEL_OK")
</pallas_src>

<mosaic_0001>
module attributes {stable_mosaic.version = 11 : i64} {
  func.func @_lca_kernel(%arg0: i32, %arg1: memref<32x256xf32, #tpu.memory_space<vmem>>, %arg2: memref<256x128xbf16, #tpu.memory_space<vmem>>, %arg3: memref<32x32xf32, #tpu.memory_space<vmem>>, %arg4: memref<32x32xf32, #tpu.memory_space<vmem>>, %arg5: memref<128x256xbf16, #tpu.memory_space<vmem>>, %arg6: memref<32x256xf32, #tpu.memory_space<vmem>>) attributes {dimension_semantics = [#tpu.dimension_semantics<parallel>], iteration_bounds = array<i64: 2>, scalar_prefetch = 0 : i64, scratch_operands = 0 : i64, tpu.core_type = #tpu.core_type<tc>, window_params = [{transform_indices = @transform_0, window_bounds = array<i64: 32, 256>}, {pipeline_mode = #tpu.pipeline_mode<synchronous>, transform_indices = @transform_1, window_bounds = array<i64: 256, 128>}, {pipeline_mode = #tpu.pipeline_mode<synchronous>, transform_indices = @transform_2, window_bounds = array<i64: 32, 32>}, {pipeline_mode = #tpu.pipeline_mode<synchronous>, transform_indices = @transform_3, window_bounds = array<i64: 32, 32>}, {pipeline_mode = #tpu.pipeline_mode<synchronous>, transform_indices = @transform_4, window_bounds = array<i64: 128, 256>}, {transform_indices = @transform_5, window_bounds = array<i64: 32, 256>}]} {
    %c0 = arith.constant 0 : index
    %c0_0 = arith.constant 0 : index
    %0 = vector.load %arg1[%c0, %c0_0] : memref<32x256xf32, #tpu.memory_space<vmem>>, vector<32x256xf32>
    %1 = arith.truncf %0 : vector<32x256xf32> to vector<32x256xbf16>
    %c0_1 = arith.constant 0 : index
    %c0_2 = arith.constant 0 : index
    %2 = vector.load %arg2[%c0_1, %c0_2] : memref<256x128xbf16, #tpu.memory_space<vmem>>, vector<256x128xbf16>
    %cst = arith.constant dense<0.000000e+00> : vector<32x128xf32>
    %3 = tpu.matmul %1, %2, %cst {dimension_numbers = #tpu.dot_dimension_numbers<[1], [0], [0], [1], [0, 0, 1, 1], [], []>} : vector<32x256xbf16>, vector<256x128xbf16>, vector<32x128xf32> -> vector<32x128xf32>
    %c0_3 = arith.constant 0 : index
    %c0_4 = arith.constant 0 : index
    %4 = vector.load %arg3[%c0_3, %c0_4] : memref<32x32xf32, #tpu.memory_space<vmem>>, vector<32x32xf32>
    %cst_5 = arith.constant dense<0.000000e+00> : vector<32x128xf32>
    %5 = tpu.matmul %4, %3, %cst_5 {dimension_numbers = #tpu.dot_dimension_numbers<[1], [0], [0], [1], [0, 0, 1, 1], [], []>} : vector<32x32xf32>, vector<32x128xf32>, vector<32x128xf32> -> vector<32x128xf32>
    %cst_6 = arith.constant 0.000000e+00 : f32
    %6 = vector.broadcast %cst_6 : f32 to vector<32x128xf32>
    %7 = arith.maximumf %5, %6 : vector<32x128xf32>
    %c0_7 = arith.constant 0 : index
    %c0_8 = arith.constant 0 : index
    %8 = vector.load %arg4[%c0_7, %c0_8] : memref<32x32xf32, #tpu.memory_space<vmem>>, vector<32x32xf32>
    %cst_9 = arith.constant dense<0.000000e+00> : vector<32x128xf32>
    %9 = tpu.matmul %8, %7, %cst_9 {dimension_numbers = #tpu.dot_dimension_numbers<[1], [0], [0], [1], [0, 0, 1, 1], [], []>} : vector<32x32xf32>, vector<32x128xf32>, vector<32x128xf32> -> vector<32x128xf32>
    %cst_10 = arith.constant 3.000000e+00 : f32
    %10 = vector.broadcast %cst_10 : f32 to vector<32x128xf32>
    %11 = arith.addf %9, %10 : vector<32x128xf32>
    %cst_11 = arith.constant 0.000000e+00 : f32
    %cst_12 = arith.constant 6.000000e+00 : f32
    %12 = vector.broadcast %cst_11 : f32 to vector<32x128xf32>
    %13 = arith.maximumf %12, %11 : vector<32x128xf32>
    %14 = vector.broadcast %cst_12 : f32 to vector<32x128xf32>
    %15 = arith.minimumf %14, %13 : vector<32x128xf32>
    %cst_13 = arith.constant 0.166666672 : f32
    %16 = vector.broadcast %cst_13 : f32 to vector<32x128xf32>
    %17 = arith.mulf %15, %16 : vector<32x128xf32>
    %18 = arith.truncf %17 : vector<32x128xf32> to vector<32x128xbf16>
    %c0_14 = arith.constant 0 : index
    %c0_15 = arith.constant 0 : index
    %19 = vector.load %arg5[%c0_14, %c0_15] : memref<128x256xbf16, #tpu.memory_space<vmem>>, vector<128x256xbf16>
    %cst_16 = arith.constant dense<0.000000e+00> : vector<32x256xf32>
    %20 = tpu.matmul %18, %19, %cst_16 {dimension_numbers = #tpu.dot_dimension_numbers<[1], [0], [0], [1], [0, 0, 1, 1], [], []>} : vector<32x128xbf16>, vector<128x256xbf16>, vector<32x256xf32> -> vector<32x256xf32>
    %21 = arith.mulf %0, %20 : vector<32x256xf32>
    %c0_17 = arith.constant 0 : index
    %c0_18 = arith.constant 0 : index
    %22 = vector.load %arg6[%c0_17, %c0_18] : memref<32x256xf32, #tpu.memory_space<vmem>>, vector<32x256xf32>
    tpu.vector_store %arg6[%c0_17, %c0_18], %21 {strides = array<i32>} : memref<32x256xf32, #tpu.memory_space<vmem>>, vector<32x256xf32>,
    return
  }
  func.func @transform_0(%arg0: i32) -> (i32, i32) {
    %c0_i32 = arith.constant 0 : i32
    %c0_i32_0 = arith.constant 0 : i32
    return %arg0, %c0_i32 : i32, i32
  }
  func.func @transform_1(%arg0: i32) -> (i32, i32) {
    %c0_i32 = arith.constant 0 : i32
    %c0_i32_0 = arith.constant 0 : i32
    %c0_i32_1 = arith.constant 0 : i32
    return %c0_i32, %c0_i32_0 : i32, i32
  }
  func.func @transform_2(%arg0: i32) -> (i32, i32) {
    %c0_i32 = arith.constant 0 : i32
    %c0_i32_0 = arith.constant 0 : i32
    %c0_i32_1 = arith.constant 0 : i32
    return %c0_i32, %c0_i32_0 : i32, i32
  }
  func.func @transform_3(%arg0: i32) -> (i32, i32) {
    %c0_i32 = arith.constant 0 : i32
    %c0_i32_0 = arith.constant 0 : i32
    %c0_i32_1 = arith.constant 0 : i32
    return %c0_i32, %c0_i32_0 : i32, i32
  }
  func.func @transform_4(%arg0: i32) -> (i32, i32) {
    %c0_i32 = arith.constant 0 : i32
    %c0_i32_0 = arith.constant 0 : i32
    %c0_i32_1 = arith.constant 0 : i32
    return %c0_i32, %c0_i32_0 : i32, i32
  }
  func.func @transform_5(%arg0: i32) -> (i32, i32) {
    %c0_i32 = arith.constant 0 : i32
    %c0_i32_0 = arith.constant 0 : i32
    return %arg0, %c0_i32 : i32, i32
  }
}

</mosaic_0001>

<llo_original>
// kernel: locality_channel_attention.1
$region0: #{locality_channel_attention.1}
  #allocation0 [shape = 'u32[]', space=smem, size = 0x4, offset = 0x4, fixed_abs, tag = 'smem constant byte address 0x4 - core index']
  #allocation1 [shape = 'u32[144,128]{1,0:T(1,128)}', space=vmem, size = 0x12000, scoped, tag = 'internal scratch']
  %s0 = inlined_call_operand.vmem [shape: f32[64,256], index: 0, kind: input, shape index: {}, may-alias: {0,5}]
  %s1 = inlined_call_operand.vmem [shape: bf16[256,128], index: 1, kind: input, shape index: {}]
  %s2 = inlined_call_operand.vmem [shape: f32[32,32], index: 2, kind: input, shape index: {}]
  %s3 = inlined_call_operand.vmem [shape: f32[32,32], index: 3, kind: input, shape index: {}]
  %s4 = inlined_call_operand.vmem [shape: bf16[128,256], index: 4, kind: input, shape index: {}]
  %s5 = inlined_call_operand.vmem [shape: f32[64,256], index: 5, kind: output, shape index: {}, may-alias: {0,5}]
  %s6 = sld [smem:[#allocation0]]
  $region53: #{locality_channel_attention.1} parent=0
    _
  %s8 = ssub.s32 1, %s6
  %s9 = scalar_select 0, %s8, %s6
  loop: start=0, step=1, limit=4
  $region2: #{locality_channel_attention.1} parent=0 // loop_pre_header
    _
  $region3: #{locality_channel_attention.1} parent=0 // loop_header
    %s11 = sphi 0, %s15
    %p12 = scmp.ge.s32.totalorder %s11, 4
    %s21 = sphi 0, %s23
    %s24 = sphi 0, %s21
    %s25 = sphi 0, %s24
    %s41 = sphi 0, %s25
    %s45 = sphi 0, %s45
    %s47 = sphi 0, %s45
    %s48 = sphi 0, %s47
    %s62 = sphi 0, %s48
    %s66 = sphi 0, %s66
    %s68 = sphi 0, %s66
    %s69 = sphi 0, %s68
    %s83 = sphi 0, %s69
    %s87 = sphi 0, %s87
    %s89 = sphi 0, %s87
    %s90 = sphi 0, %s89
    %s104 = sphi 0, %s90
    %s108 = sphi 0, %s108
    %s110 = sphi 0, %s108
    %s111 = sphi 0, %s110
    %s125 = sphi 0, %s111
    %s131 = sphi 0, %s133
    %s134 = sphi 0, %s131
    %s135 = sphi 0, %s134
    %s151 = sphi 0, %s135
  $region4: #{locality_channel_attention.1} parent=0 // loop_header_branch
    %14 = sbr.rel (%p12) target = $region8
  $region5: #{locality_channel_attention.1} parent=0 // loop_body
    %s16 = ssub.s32 %s11, 1
    %s17 = ssub.s32 %s11, 2
    %s18 = sadd.s32 %s11, 1
    %s19 = ssub.s32 %s11, %s18
    %p20 = scmp.eq.s32.totalorder %s19, 0
    %s22 = sadd.s32 %s21, 1
    %s23 = scalar_select %p20, %s21, %s22
    %p26 = pneg %p20
    %p27 = scmp.eq.s32.totalorder %s11, 1
    %p28 = por %p26, %p27
    %p29 = scmp.ne.s32.totalorder %s21, %s24
    %p30 = scmp.eq.s32.totalorder %s11, 0
    %p31 = por %p29, %p30
    %p32 = scmp.ne.s32.totalorder %s21, %s24
    %p33 = scmp.eq.s32.totalorder %s16, 1
    %p34 = por %p32, %p33
    %p35 = scmp.ne.s32.totalorder %s24, %s25
    %p36 = scmp.eq.s32.totalorder %s16, 0
    %p37 = por %p35, %p36
    %p38 = scmp.ne.s32.totalorder %s24, %s25
    %p39 = scmp.eq.s32.totalorder %s17, 1
    %p40 = por %p38, %p39
    %p42 = scmp.ne.s32.totalorder %s25, %s41
    %p43 = scmp.eq.s32.totalorder %s17, 0
    %p44 = por %p42, %p43
    %s46 = sadd.s32 %s45, 1
    %p49 = scmp.eq.s32.totalorder %s11, 1
    %p50 = scmp.ne.s32.totalorder %s45, %s47
    %p51 = scmp.eq.s32.totalorder %s11, 0
    %p52 = por %p50, %p51
    %p53 = scmp.ne.s32.totalorder %s45, %s47
    %p54 = scmp.eq.s32.totalorder %s16, 1
    %p55 = por %p53, %p54
    %p56 = scmp.ne.s32.totalorder %s47, %s48
    %p57 = scmp.eq.s32.totalorder %s16, 0
    %p58 = por %p56, %p57
    %p59 = scmp.ne.s32.totalorder %s47, %s48
    %p60 = scmp.eq.s32.totalorder %s17, 1
    %p61 = por %p59, %p60
    %p63 = scmp.ne.s32.totalorder %s48, %s62
    %p64 = scmp.eq.s32.totalorder %s17, 0
    %p65 = por %p63, %p64
    %s67 = sadd.s32 %s66, 1
    %p70 = scmp.eq.s32.totalorder %s11, 1
    %p71 = scmp.ne.s32.totalorder %s66, %s68
    %p72 = scmp.eq.s32.totalorder %s11, 0
    %p73 = por %p71, %p72
    %p74 = scmp.ne.s32.totalorder %s66, %s68
    %p75 = scmp.eq.s32.totalorder %s16, 1
    %p76 = por %p74, %p75
    %p77 = scmp.ne.s32.totalorder %s68, %s69
    %p78 = scmp.eq.s32.totalorder %s16, 0
    %p79 = por %p77, %p78
    %p80 = scmp.ne.s32.totalorder %s68, %s69
    %p81 = scmp.eq.s32.totalorder %s17, 1
    %p82 = por %p80, %p81
    %p84 = scmp.ne.s32.totalorder %s69, %s83
    %p85 = scmp.eq.s32.totalorder %s17, 0
    %p86 = por %p84, %p85
    %s88 = sadd.s32 %s87, 1
    %p91 = scmp.eq.s32.totalorder %s11, 1
    %p92 = scmp.ne.s32.totalorder %s87, %s89
    %p93 = scmp.eq.s32.totalorder %s11, 0
    %p94 = por %p92, %p93
    %p95 = scmp.ne.s32.totalorder %s87, %s89
    %p96 = scmp.eq.s32.totalorder %s16, 1
    %p97 = por %p95, %p96
    %p98 = scmp.ne.s32.totalorder %s89, %s90
    %p99 = scmp.eq.s32.totalorder %s16, 0
    %p100 = por %p98, %p99
    %p101 = scmp.ne.s32.totalorder %s89, %s90
    %p102 = scmp.eq.s32.totalorder %s17, 1
    %p103 = por %p101, %p102
    %p105 = scmp.ne.s32.totalorder %s90, %s104
    %p106 = scmp.eq.s32.totalorder %s17, 0
    %p107 = por %p105, %p106
    %s109 = sadd.s32 %s108, 1
    %p112 = scmp.eq.s32.totalorder %s11, 1
    %p113 = scmp.ne.s32.totalorder %s108, %s110
    %p114 = scmp.eq.s32.totalorder %s11, 0
    %p115 = por %p113, %p114
    %p116 = scmp.ne.s32.totalorder %s108, %s110
    %p117 = scmp.eq.s32.totalorder %s16, 1
    %p118 = por %p116, %p117
    %p119 = scmp.ne.s32.totalorder %s110, %s111
    %p120 = scmp.eq.s32.totalorder %s16, 0
    %p121 = por %p119, %p120
    %p122 = scmp.ne.s32.totalorder %s110, %s111
    %p123 = scmp.eq.s32.totalorder %s17, 1
    %p124 = por %p122, %p123
    %p126 = scmp.ne.s32.totalorder %s111, %s125
    %p127 = scmp.eq.s32.totalorder %s17, 0
    %p128 = por %p126, %p127
    %s129 = ssub.s32 %s11, %s18
    %p130 = scmp.eq.s32.totalorder %s129, 0
    %s132 = sadd.s32 %s131, 1
    %s133 = scalar_select %p130, %s131, %s132
    %p136 = pneg %p130
    %p137 = scmp.eq.s32.totalorder %s11, 1
    %p138 = por %p136, %p137
    %p139 = scmp.ne.s32.totalorder %s131, %s134
    %p140 = scmp.eq.s32.totalorder %s11, 0
    %p141 = por %p139, %p140
    %p142 = scmp.ne.s32.totalorder %s131, %s134
    %p143 = scmp.eq.s32.totalorder %s16, 1
    %p144 = por %p142, %p143
    %p145 = scmp.ne.s32.totalorder %s134, %s135
    %p146 = scmp.eq.s32.totalorder %s16, 0
    %p147 = por %p145, %p146
    %p148 = scmp.ne.s32.totalorder %s134, %s135
    %p149 = scmp.eq.s32.totalorder %s17, 1
    %p150 = por %p148, %p149
    %p152 = scmp.ne.s32.totalorder %s135, %s151
    %p153 = scmp.eq.s32.totalorder %s17, 0
    %p154 = por %p152, %p153
    %p155 = scmp.le.s32.totalorder 1, %s11
    %p156 = scmp.lt.s32.totalorder %s11, 3
    %p157 = pnand %p155, %p156
    %p158 = pneg %p157
    // Predicated region
    $region9: #{locality_channel_attention.1} parent=5 // pred_check
      _
    $region10: #{locality_channel_attention.1} parent=5 // pred_check_branch
      %160 = sbr.rel (%p157) target = $region12
    $region11: #{locality_channel_attention.1} parent=5 // pred_region
      %s161 = ssub.s32 %s11, 1
      // Predicated region
      $region13: #{locality_channel_attention.1} parent=11 // pred_check
        %p162 = pneg %p58
      $region14: #{locality_channel_attention.1} parent=11 // pred_check_branch
        %164 = sbr.rel (%p162) target = $region16
      $region15: #{locality_channel_attention.1} parent=11 // pred_region
        _
      $region16: #{locality_channel_attention.1} parent=11 // pred_fallthru
        _
      // Predicated region
      $region17: #{locality_channel_attention.1} parent=11 // pred_check
        %p165 = pneg %p79
      $region18: #{locality_channel_attention.1} parent=11 // pred_check_branch
        %167 = sbr.rel (%p165) target = $region20
      $region19: #{locality_channel_attention.1} parent=11 // pred_region
        _
      $region20: #{locality_channel_attention.1} parent=11 // pred_fallthru
        _
      // Predicated region
      $region21: #{locality_channel_attention.1} parent=11 // pred_check
        %p168 = pneg %p100
      $region22: #{locality_channel_attention.1} parent=11 // pred_check_branch
        %170 = sbr.rel (%p168) target = $region24
      $region23: #{locality_channel_attention.1} parent=11 // pred_region
        _
      $region24: #{locality_channel_attention.1} parent=11 // pred_fallthru
        _
      // Predicated region
      $region25: #{locality_channel_attention.1} parent=11 // pred_check
        %p171 = pneg %p121
      $region26: #{locality_channel_attention.1} parent=11 // pred_check_branch
        %173 = sbr.rel (%p171) target = $region28
      $region27: #{locality_channel_attention.1} parent=11 // pred_region
        _
      $region28: #{locality_channel_attention.1} parent=11 // pred_fallthru
        _
    $region12: #{locality_channel_attention.1} parent=5 // pred_fallthru
      _
    %p174 = scmp.lt.s32.totalorder %s11, 2
    // Predicated region
    $region29: #{locality_channel_attention.1} parent=5 // pred_check
      %p175 = pneg %p174
    $region30: #{locality_channel_attention.1} parent=5 // pred_check_branch
      %177 = sbr.rel (%p175) target = $region32
    $region31: #{locality_channel_attention.1} parent=5 // pred_region
      // Predicated region
      $region33: #{locality_channel_attention.1} parent=31 // pred_check
        %p178 = pneg %p31
      $region34: #{locality_channel_attention.1} parent=31 // pred_check_branch
        %180 = sbr.rel (%p178) target = $region36
      $region35: #{locality_channel_attention.1} parent=31 // pred_region
        %s181 = smul.u32 4, %s11
        %p182 = scmp.lt.s32.totalorder %s181, 7
        %s183 = scalar_select %p182, %s181, 7
        %s184 = smul.addr %s183, 2
        %s185 = smul.addr %s184, 8
        %s186 = scalar_lea.vmem %s0, %s185
        %s187 = smul.u32 4, %s11
      $region36: #{locality_channel_attention.1} parent=31 // pred_fallthru
        _
    $region32: #{locality_channel_attention.1} parent=5 // pred_fallthru
      _
    %p188 = scmp.le.s32.totalorder 1, %s11
    %p189 = scmp.lt.s32.totalorder %s11, 3
    %p190 = pnand %p188, %p189
    %p191 = pneg %p190
    // Predicated region
    $region37: #{locality_channel_attention.1} parent=5 // pred_check
      _
    $region38: #{locality_channel_attention.1} parent=5 // pred_check_branch
      %193 = sbr.rel (%p190) target = $region40
    $region39: #{locality_channel_attention.1} parent=5 // pred_region
      %s194 = ssub.s32 %s11, 1
      %s195 = smul.u32 4, %s16
      %p196 = scmp.lt.s32.totalorder %s195, 7
      %s197 = scalar_select %p196, %s195, 7
      %s198 = smul.addr %s197, 2
      %s199 = smul.addr %s198, 8
      %s200 = scalar_lea.vmem %s0, %s199
      %p201 = pneg %p37
      %p202 = pneg %p34
      %p203 = pneg %p58
      %p204 = pneg %p55
      %p205 = pneg %p79
      %p206 = pneg %p76
      %p207 = pneg %p100
      %p208 = pneg %p97
      %p209 = pneg %p121
      %p210 = pneg %p118
      %p211 = pneg %p147
      %p212 = pneg %p144
      %s213 = smul.u32 4, %s16
      %p214 = scmp.lt.s32.totalorder %s213, 7
      %s215 = scalar_select %p214, %s213, 7
      %s216 = smul.addr %s215, 2
      %s217 = smul.addr %s216, 8
      %s218 = scalar_lea.vmem %s5, %s217
      %s219 = smul.u32 4, %s16
      %p220 = scmp.lt.s32.totalorder %s219, 7
      %s221 = scalar_select %p220, %s219, 7
      %s222 = smul.addr %s221, 2
      %s223 = smul.addr %s222, 8
      %s224 = scalar_lea.vmem %s0, %s223
      %s225 = smul.u32 4, %s16
      %s226 = smul.u32 4, %s16
      %p227 = scmp.lt.s32.totalorder %s226, 7
      %s228 = scalar_select %p227, %s226, 7
      %s229 = smul.addr %s228, 2
      %s230 = smul.addr %s229, 8
      %s231 = scalar_lea.vmem %s5, %s230
      %s232 = smul.u32 4, %s16
      %v234 = vld [vmem:[%s224] sm:$0xff]
      %v235 = vld [vmem:[%s224 + $0x8] sm:$0xff]
      %v236 = vld [vmem:[%s224 + $0x10] sm:$0xff]
      %v237 = vld [vmem:[%s224 + $0x18] sm:$0xff]
      %v238 = vld [vmem:[%s224 + $0x20] sm:$0xff]
      %v239 = vld [vmem:[%s224 + $0x28] sm:$0xff]
      %v240 = vld [vmem:[%s224 + $0x30] sm:$0xff]
      %v241 = vld [vmem:[%s224 + $0x38] sm:$0xff]
      %v242 = vpack.c.bf16 %v236, %v234
      %v243 = vpack.c.bf16 %v237, %v235
      %v244 = vpack.c.bf16 %v240, %v238
      %v245 = vpack.c.bf16 %v241, %v239
      %v246 = vld [vmem:[%s1] sm:$0xf]
      %v247 = vld [vmem:[%s1 + $0x4] sm:$0xf]
      %v248 = vld [vmem:[%s1 + $0x8] sm:$0xf]
      %v249 = vld [vmem:[%s1 + $0xc] sm:$0xf]
      %v250 = vld [vmem:[%s1 + $0x10] sm:$0xf]
      %v251 = vld [vmem:[%s1 + $0x14] sm:$0xf]
      %v252 = vld [vmem:[%s1 + $0x18] sm:$0xf]
      %v253 = vld [vmem:[%s1 + $0x1c] sm:$0xf]
      %v254 = vld [vmem:[%s1 + $0x20] sm:$0xf]
      %v255 = vld [vmem:[%s1 + $0x24] sm:$0xf]
      %v256 = vld [vmem:[%s1 + $0x28] sm:$0xf]
      %v257 = vld [vmem:[%s1 + $0x2c] sm:$0xf]
      %v258 = vld [vmem:[%s1 + $0x30] sm:$0xf]
      %v259 = vld [vmem:[%s1 + $0x34] sm:$0xf]
      %v260 = vld [vmem:[%s1 + $0x38] sm:$0xf]
      %v261 = vld [vmem:[%s1 + $0x3c] sm:$0xf]
      %v262 = vld [vmem:[%s1 + $0x40] sm:$0xf]
      %v263 = vld [vmem:[%s1 + $0x44] sm:$0xf]
      %v264 = vld [vmem:[%s1 + $0x48] sm:$0xf]
      %v265 = vld [vmem:[%s1 + $0x4c] sm:$0xf]
      %v266 = vld [vmem:[%s1 + $0x50] sm:$0xf]
      %v267 = vld [vmem:[%s1 + $0x54] sm:$0xf]
      %v268 = vld [vmem:[%s1 + $0x58] sm:$0xf]
      %v269 = vld [vmem:[%s1 + $0x5c] sm:$0xf]
      %v270 = vld [vmem:[%s1 + $0x60] sm:$0xf]
      %v271 = vld [vmem:[%s1 + $0x64] sm:$0xf]
      %v272 = vld [vmem:[%s1 + $0x68] sm:$0xf]
      %v273 = vld [vmem:[%s1 + $0x6c] sm:$0xf]
      %v274 = vld [vmem:[%s1 + $0x70] sm:$0xf]
      %v275 = vld [vmem:[%s1 + $0x74] sm:$0xf]
      %v276 = vld [vmem:[%s1 + $0x78] sm:$0xf]
      %v277 = vld [vmem:[%s1 + $0x7c] sm:$0xf]
      %v310 = vunpack.c.l.b16 %v246
      %v311 = vunpack.c.l.b16 %v247
      %v312 = vunpack.c.l.b16 %v248
      %v313 = vunpack.c.l.b16 %v249
      %v314 = vunpack.c.l.b16 %v250
      %v315 = vunpack.c.l.b16 %v251
      %v316 = vunpack.c.l.b16 %v252
      %v317 = vunpack.c.l.b16 %v253
      %v318 = vunpack.c.l.b16 %v254
      %v319 = vunpack.c.l.b16 %v255
      %v320 = vunpack.c.l.b16 %v256
      %v321 = vunpack.c.l.b16 %v257
      %v322 = vunpack.c.l.b16 %v258
      %v323 = vunpack.c.l.b16 %v259
      %v324 = vunpack.c.l.b16 %v260
      %v325 = vunpack.c.l.b16 %v261
      %v326 = vunpack.c.l.b16 %v262
      %v327 = vunpack.c.l.b16 %v263
      %v328 = vunpack.c.l.b16 %v264
      %v329 = vunpack.c.l.b16 %v265
      %v330 = vunpack.c.l.b16 %v266
      %v331 = vunpack.c.l.b16 %v267
      %v332 = vunpack.c.l.b16 %v268
      %v333 = vunpack.c.l.b16 %v269
      %v334 = vunpack.c.l.b16 %v270
      %v335 = vunpack.c.l.b16 %v271
      %v336 = vunpack.c.l.b16 %v272
      %v337 = vunpack.c.l.b16 %v273
      %v338 = vunpack.c.l.b16 %v274
      %v339 = vunpack.c.l.b16 %v275
      %v340 = vunpack.c.l.b16 %v276
      %v341 = vunpack.c.l.b16 %v277
      %v342 = vpack.c.b16 %v311, %v310
      %v343 = vpack.c.b16 %v313, %v312
      %v344 = vpack.c.b16 %v315, %v314
      %v345 = vpack.c.b16 %v317, %v316
      %v346 = vpack.c.b16 %v319, %v318
      %v347 = vpack.c.b16 %v321, %v320
      %v348 = vpack.c.b16 %v323, %v322
      %v349 = vpack.c.b16 %v325, %v324
      %v350 = vpack.c.b16 %v327, %v326
      %v351 = vpack.c.b16 %v329, %v328
      %v352 = vpack.c.b16 %v331, %v330
      %v353 = vpack.c.b16 %v333, %v332
      %v354 = vpack.c.b16 %v335, %v334
      %v355 = vpack.c.b16 %v337, %v336
      %v356 = vpack.c.b16 %v339, %v338
      %v357 = vpack.c.b16 %v341, %v340
      %374 = vmatprep.subr.bf16.mxu0 0
      %375 = vmatpush1.bf16.msra.mxu0 %v349
      %376 = vmatprep.subr.bf16.mxu0 0
      %377 = vmatpush1.bf16.msra.mxu0 %v348
      %378 = vmatprep.subr.bf16.mxu0 0
      %379 = vmatpush1.bf16.msra.mxu0 %v347
      %380 = vmatprep.subr.bf16.mxu0 0
      %381 = vmatpush1.bf16.msra.mxu0 %v346
      %382 = vmatprep.subr.bf16.mxu0 0
      %383 = vmatpush1.bf16.msra.mxu0 %v345
      %384 = vmatprep.subr.bf16.mxu0 0
      %385 = vmatpush1.bf16.msra.mxu0 %v344
      %386 = vmatprep.subr.bf16.mxu0 0
      %387 = vmatpush1.bf16.msra.mxu0 %v343
      %388 = vmatprep.subr.bf16.mxu0 0
      %389 = vmatpush1.bf16.msra.mxu0 %v342
      %390 = vmatprep.subr.bf16.mxu0 0
      %391 = vmatpush2.bf16.msra.mxu0 %v357
      %392 = vmatprep.subr.bf16.mxu0 0
      %393 = vmatpush2.bf16.msra.mxu0 %v356
      %394 = vmatprep.subr.bf16.mxu0 0
      %395 = vmatpush2.bf16.msra.mxu0 %v355
      %396 = vmatprep.subr.bf16.mxu0 0
      %397 = vmatpush2.bf16.msra.mxu0 %v354
      %398 = vmatprep.subr.bf16.mxu0 0
      %399 = vmatpush2.bf16.msra.mxu0 %v353
      %400 = vmatprep.subr.bf16.mxu0 0
      %401 = vmatpush2.bf16.msra.mxu0 %v352
      %402 = vmatprep.subr.bf16.mxu0 0
      %403 = vmatpush2.bf16.msra.mxu0 %v351
      %404 = vmatprep.subr.bf16.mxu0 0
      %405 = vmatpush2.bf16.msra.mxu0 %v350
      %406 = vmatprep.mubr.bf16.mxu0 %v243
      %407 = vmatmul.mubr.bf16.gmra.mxu0 %v242
      %v408 = vpop.f32.mrf.mxu0
      %v409 = vadd.f32 0.0, %v408
      %v410 = vpop.f32.mrf.mxu0
      %v411 = vpop.f32.mrf.mxu0
      %v412 = vadd.f32 0.0, %v411
      %v413 = vpop.f32.mrf.mxu0
      %414 = vmatprep.mubr.bf16.mxu0 %v245
      %415 = vmatmul.mubr.bf16.gmra.mxu0 %v244
      %v416 = vpop.f32.mrf.mxu0
      %v417 = vadd.f32 0.0, %v416
      %v418 = vpop.f32.mrf.mxu0
      %v419 = vpop.f32.mrf.mxu0
      %v420 = vadd.f32 0.0, %v419
      %v421 = vpop.f32.mrf.mxu0
      %422 = vdwg.mxu0
      %v423 = vld [vmem:[%s2] sm:$0xff]
      %v424 = vld [vmem:[%s2 + $0x8] sm:$0xff]
      %v425 = vld [vmem:[%s2 + $0x10] sm:$0xff]
      %v426 = vld [vmem:[%s2 + $0x18] sm:$0xff]
      %vm427 = vcmask 261120
      %v429 = vsel %vm427, %v423, 0
      %v432 = vsel %vm427, %v424, 0
      %v435 = vsel %vm427, %v425, 0
      %v438 = vsel %vm427, %v426, 0
      %440 = vmatprep.subr.mxu0 0.0
      %441 = vmatpush1.msra.mxu0 0.0
      %442 = vmatprep.subr.mxu0 0.0
      %443 = vmatpush1.msra.mxu0 0.0
      %444 = vmatprep.subr.mxu0 0.0
      %445 = vmatpush1.msra.mxu0 0.0
      %446 = vmatprep.subr.mxu0 0.0
      %447 = vmatpush1.msra.mxu0 0.0
      %448 = vmatprep.subr.mxu0 0.0
      %449 = vmatpush1.msra.mxu0 0.0
      %450 = vmatprep.subr.mxu0 0.0
      %451 = vmatpush1.msra.mxu0 0.0
      %452 = vmatprep.subr.mxu0 0.0
      %453 = vmatpush1.msra.mxu0 0.0
      %454 = vmatprep.subr.mxu0 0.0
      %455 = vmatpush1.msra.mxu0 0.0
      %456 = vmatprep.subr.mxu0 0.0
      %457 = vmatpush1.msra.mxu0 0.0
      %458 = vmatprep.subr.mxu0 0.0
      %459 = vmatpush1.msra.mxu0 0.0
      %460 = vmatprep.subr.mxu0 0.0
      %461 = vmatpush1.msra.mxu0 0.0
      %462 = vmatprep.subr.mxu0 0.0
      %463 = vmatpush1.msra.mxu0 0.0
      %464 = vmatprep.subr.mxu0 0.0
      %465 = vmatpush1.msra.mxu0 %v420
      %466 = vmatprep.subr.mxu0 0.0
      %467 = vmatpush1.msra.mxu0 %v417
      %468 = vmatprep.subr.mxu0 0.0
      %469 = vmatpush1.msra.mxu0 %v412
      %470 = vmatprep.subr.mxu0 0.0
      %471 = vmatpush1.msra.mxu0 %v409
      %472 = vmatprep.subr.mxu0 0.0
      %473 = vmatpush2.msra.mxu0 0.0
      %474 = vmatprep.subr.mxu0 0.0
      %475 = vmatpush2.msra.mxu0 0.0
      %476 = vmatprep.subr.mxu0 0.0
      %477 = vmatpush2.msra.mxu0 0.0
      %478 = vmatprep.subr.mxu0 0.0
      %479 = vmatpush2.msra.mxu0 0.0
      %480 = vmatprep.subr.mxu0 0.0
      %481 = vmatpush2.msra.mxu0 0.0
      %482 = vmatprep.subr.mxu0 0.0
      %483 = vmatpush2.msra.mxu0 0.0
      %484 = vmatprep.subr.mxu0 0.0
      %485 = vmatpush2.msra.mxu0 0.0
      %486 = vmatprep.subr.mxu0 0.0
      %487 = vmatpush2.msra.mxu0 0.0
      %488 = vmatprep.subr.mxu0 0.0
      %489 = vmatpush2.msra.mxu0 0.0
      %490 = vmatprep.subr.mxu0 0.0
      %491 = vmatpush2.msra.mxu0 0.0
      %492 = vmatprep.subr.mxu0 0.0
      %493 = vmatpush2.msra.mxu0 0.0
      %494 = vmatprep.subr.mxu0 0.0
      %495 = vmatpush2.msra.mxu0 0.0
      %496 = vmatprep.subr.mxu0 0.0
      %497 = vmatpush2.msra.mxu0 0.0
      %498 = vmatprep.subr.mxu0 0.0
      %499 = vmatpush2.msra.mxu0 0.0
      %500 = vmatprep.subr.mxu0 0.0
      %501 = vmatpush2.msra.mxu0 0.0
      %502 = vmatprep.subr.mxu0 0.0
      %503 = vmatpush2.msra.mxu0 0.0
      %504 = vmatprep.mubr.f32.mxu0 0.0
      %505 = vmatmul.mubr.f32.gmra.mxu0 %v429
      %v506 = vpop.f32.mrf.mxu0
      %v507 = vadd.f32 0.0, %v506
      %v508 = vpop.f32.mrf.mxu0
      %509 = vmatprep.mubr.f32.mxu0 0.0
      %510 = vmatmul.mubr.f32.gmra.mxu0 %v432
      %v511 = vpop.f32.mrf.mxu0
      %v512 = vadd.f32 0.0, %v511
      %v513 = vpop.f32.mrf.mxu0
      %514 = vmatprep.mubr.f32.mxu0 0.0
      %515 = vmatmul.mubr.f32.gmra.mxu0 %v435
      %v516 = vpop.f32.mrf.mxu0
      %v517 = vadd.f32 0.0, %v516
      %v518 = vpop.f32.mrf.mxu0
      %519 = vmatprep.mubr.f32.mxu0 0.0
      %520 = vmatmul.mubr.f32.gmra.mxu0 %v438
      %v521 = vpop.f32.mrf.mxu0
      %v522 = vadd.f32 0.0, %v521
      %v523 = vpop.f32.mrf.mxu0
      %524 = vdwg.mxu0
      %v525 = vmax.f32 %v507, 0.0
      %v526 = vmax.f32 %v512, 0.0
      %v527 = vmax.f32 %v517, 0.0
      %v528 = vmax.f32 %v522, 0.0
      %v529 = vld [vmem:[%s3] sm:$0xff]
      %v530 = vld [vmem:[%s3 + $0x8] sm:$0xff]
      %v531 = vld [vmem:[%s3 + $0x10] sm:$0xff]
      %v532 = vld [vmem:[%s3 + $0x18] sm:$0xff]
      %v534 = vsel %vm427, %v529, 0
      %v537 = vsel %vm427, %v530, 0
      %v540 = vsel %vm427, %v531, 0
      %v543 = vsel %vm427, %v532, 0
      %545 = vmatprep.subr.mxu0 0.0
      %546 = vmatpush1.msra.mxu0 0.0
      %547 = vmatprep.subr.mxu0 0.0
      %548 = vmatpush1.msra.mxu0 0.0
      %549 = vmatprep.subr.mxu0 0.0
      %550 = vmatpush1.msra.mxu0 0.0
      %551 = vmatprep.subr.mxu0 0.0
      %552 = vmatpush1.msra.mxu0 0.0
      %553 = vmatprep.subr.mxu0 0.0
      %554 = vmatpush1.msra.mxu0 0.0
      %555 = vmatprep.subr.mxu0 0.0
      %556 = vmatpush1.msra.mxu0 0.0
      %557 = vmatprep.subr.mxu0 0.0
      %558 = vmatpush1.msra.mxu0 0.0
      %559 = vmatprep.subr.mxu0 0.0
      %560 = vmatpush1.msra.mxu0 0.0
      %561 = vmatprep.subr.mxu0 0.0
      %562 = vmatpush1.msra.mxu0 0.0
      %563 = vmatprep.subr.mxu0 0.0
      %564 = vmatpush1.msra.mxu0 0.0
      %565 = vmatprep.subr.mxu0 0.0
      %566 = vmatpush1.msra.mxu0 0.0
      %567 = vmatprep.subr.mxu0 0.0
      %568 = vmatpush1.msra.mxu0 0.0
      %569 = vmatprep.subr.mxu0 0.0
      %570 = vmatpush1.msra.mxu0 %v528
      %571 = vmatprep.subr.mxu0 0.0
      %572 = vmatpush1.msra.mxu0 %v527
      %573 = vmatprep.subr.mxu0 0.0
      %574 = vmatpush1.msra.mxu0 %v526
      %575 = vmatprep.subr.mxu0 0.0
      %576 = vmatpush1.msra.mxu0 %v525
      %577 = vmatprep.subr.mxu0 0.0
      %578 = vmatpush2.msra.mxu0 0.0
      %579 = vmatprep.subr.mxu0 0.0
      %580 = vmatpush2.msra.mxu0 0.0
      %581 = vmatprep.subr.mxu0 0.0
      %582 = vmatpush2.msra.mxu0 0.0
      %583 = vmatprep.subr.mxu0 0.0
      %584 = vmatpush2.msra.mxu0 0.0
      %585 = vmatprep.subr.mxu0 0.0
      %586 = vmatpush2.msra.mxu0 0.0
      %587 = vmatprep.subr.mxu0 0.0
      %588 = vmatpush2.msra.mxu0 0.0
      %589 = vmatprep.subr.mxu0 0.0
      %590 = vmatpush2.msra.mxu0 0.0
      %591 = vmatprep.subr.mxu0 0.0
      %592 = vmatpush2.msra.mxu0 0.0
      %593 = vmatprep.subr.mxu0 0.0
      %594 = vmatpush2.msra.mxu0 0.0
      %595 = vmatprep.subr.mxu0 0.0
      %596 = vmatpush2.msra.mxu0 0.0
      %597 = vmatprep.subr.mxu0 0.0
      %598 = vmatpush2.msra.mxu0 0.0
      %599 = vmatprep.subr.mxu0 0.0
      %600 = vmatpush2.msra.mxu0 0.0
      %601 = vmatprep.subr.mxu0 0.0
      %602 = vmatpush2.msra.mxu0 0.0
      %603 = vmatprep.subr.mxu0 0.0
      %604 = vmatpush2.msra.mxu0 0.0
      %605 = vmatprep.subr.mxu0 0.0
      %606 = vmatpush2.msra.mxu0 0.0
      %607 = vmatprep.subr.mxu0 0.0
      %608 = vmatpush2.msra.mxu0 0.0
      %609 = vmatprep.mubr.f32.mxu0 0.0
      %610 = vmatmul.mubr.f32.gmra.mxu0 %v534
      %v611 = vpop.f32.mrf.mxu0
      %v612 = vadd.f32 3.0, %v611
      %v613 = vpop.f32.mrf.mxu0
      %614 = vmatprep.mubr.f32.mxu0 0.0
      %615 = vmatmul.mubr.f32.gmra.mxu0 %v537
      %v616 = vpop.f32.mrf.mxu0
      %v617 = vadd.f32 3.0, %v616
      %v618 = vpop.f32.mrf.mxu0
      %619 = vmatprep.mubr.f32.mxu0 0.0
      %620 = vmatmul.mubr.f32.gmra.mxu0 %v540
      %v621 = vpop.f32.mrf.mxu0
      %v622 = vadd.f32 3.0, %v621
      %v623 = vpop.f32.mrf.mxu0
      %624 = vmatprep.mubr.f32.mxu0 0.0
      %625 = vmatmul.mubr.f32.gmra.mxu0 %v543
      %v626 = vpop.f32.mrf.mxu0
      %v627 = vadd.f32 3.0, %v626
      %v628 = vpop.f32.mrf.mxu0
      %629 = vdwg.mxu0
      %v630 = vmax.f32 %v612, 0.0
      %v631 = vmax.f32 %v617, 0.0
      %v632 = vmax.f32 %v622, 0.0
      %v633 = vmax.f32 %v627, 0.0
      %v634 = vmin.f32 %v630, 6.0
      %v635 = vmin.f32 %v631, 6.0
      %v636 = vmin.f32 %v632, 6.0
      %v637 = vmin.f32 %v633, 6.0
      %v638 = vmul.f32 %v634, 0.16666667
      %v639 = vmul.f32 %v635, 0.16666667
      %v640 = vmul.f32 %v636, 0.16666667
      %v641 = vmul.f32 %v637, 0.16666667
      %v642 = vpack.c.bf16 %v639, %v638
      %v643 = vpack.c.bf16 %v641, %v640
      %v644 = vld [vmem:[%s4] sm:$0xff]
      %v645 = vld [vmem:[%s4 + $0x8] sm:$0xff]
      %v646 = vld [vmem:[%s4 + $0x10] sm:$0xff]
      %v647 = vld [vmem:[%s4 + $0x18] sm:$0xff]
      %v648 = vld [vmem:[%s4 + $0x20] sm:$0xff]
      %v649 = vld [vmem:[%s4 + $0x28] sm:$0xff]
      %v650 = vld [vmem:[%s4 + $0x30] sm:$0xff]
      %v651 = vld [vmem:[%s4 + $0x38] sm:$0xff]
      %v652 = vld [vmem:[%s4 + $0x40] sm:$0xff]
      %v653 = vld [vmem:[%s4 + $0x48] sm:$0xff]
      %v654 = vld [vmem:[%s4 + $0x50] sm:$0xff]
      %v655 = vld [vmem:[%s4 + $0x58] sm:$0xff]
      %v656 = vld [vmem:[%s4 + $0x60] sm:$0xff]
      %v657 = vld [vmem:[%s4 + $0x68] sm:$0xff]
      %v658 = vld [vmem:[%s4 + $0x70] sm:$0xff]
      %v659 = vld [vmem:[%s4 + $0x78] sm:$0xff]
      %v676 = vunpack.c.l.b16 %v644
      %v677 = vunpack.c.h.b16 %v644
      %v678 = vunpack.c.l.b16 %v645
      %v679 = vunpack.c.h.b16 %v645
      %v680 = vunpack.c.l.b16 %v646
      %v681 = vunpack.c.h.b16 %v646
      %v682 = vunpack.c.l.b16 %v647
      %v683 = vunpack.c.h.b16 %v647
      %v684 = vunpack.c.l.b16 %v648
      %v685 = vunpack.c.h.b16 %v648
      %v686 = vunpack.c.l.b16 %v649
      %v687 = vunpack.c.h.b16 %v649
      %v688 = vunpack.c.l.b16 %v650
      %v689 = vunpack.c.h.b16 %v650
      %v690 = vunpack.c.l.b16 %v651
      %v691 = vunpack.c.h.b16 %v651
      %v692 = vunpack.c.l.b16 %v652
      %v693 = vunpack.c.h.b16 %v652
      %v694 = vunpack.c.l.b16 %v653
      %v695 = vunpack.c.h.b16 %v653
      %v696 = vunpack.c.l.b16 %v654
      %v697 = vunpack.c.h.b16 %v654
      %v698 = vunpack.c.l.b16 %v655
      %v699 = vunpack.c.h.b16 %v655
      %v700 = vunpack.c.l.b16 %v656
      %v701 = vunpack.c.h.b16 %v656
      %v702 = vunpack.c.l.b16 %v657
      %v703 = vunpack.c.h.b16 %v657
      %v704 = vunpack.c.l.b16 %v658
      %v705 = vunpack.c.h.b16 %v658
      %v706 = vunpack.c.l.b16 %v659
      %v707 = vunpack.c.h.b16 %v659
      %v708 = vpack.c.b16 %v678, %v676
      %v709 = vpack.c.b16 %v679, %v677
      %v710 = vpack.c.b16 %v682, %v680
      %v711 = vpack.c.b16 %v683, %v681
      %v712 = vpack.c.b16 %v686, %v684
      %v713 = vpack.c.b16 %v687, %v685
      %v714 = vpack.c.b16 %v690, %v688
      %v715 = vpack.c.b16 %v691, %v689
      %v716 = vpack.c.b16 %v694, %v692
      %v717 = vpack.c.b16 %v695, %v693
      %v718 = vpack.c.b16 %v698, %v696
      %v719 = vpack.c.b16 %v699, %v697
      %v720 = vpack.c.b16 %v702, %v700
      %v721 = vpack.c.b16 %v703, %v701
      %v722 = vpack.c.b16 %v706, %v704
      %v723 = vpack.c.b16 %v707, %v705
      %740 = vmatprep.subr.bf16.mxu0 %v723
      %741 = vmatpush1.bf16.msra.mxu0 %v722
      %742 = vmatprep.subr.bf16.mxu0 %v721
      %743 = vmatpush1.bf16.msra.mxu0 %v720
      %744 = vmatprep.subr.bf16.mxu0 %v719
      %745 = vmatpush1.bf16.msra.mxu0 %v718
      %746 = vmatprep.subr.bf16.mxu0 %v717
      %747 = vmatpush1.bf16.msra.mxu0 %v716
      %748 = vmatprep.subr.bf16.mxu0 %v715
      %749 = vmatpush1.bf16.msra.mxu0 %v714
      %750 = vmatprep.subr.bf16.mxu0 %v713
      %751 = vmatpush1.bf16.msra.mxu0 %v712
      %752 = vmatprep.subr.bf16.mxu0 %v711
      %753 = vmatpush1.bf16.msra.mxu0 %v710
      %754 = vmatprep.subr.bf16.mxu0 %v709
      %755 = vmatpush1.bf16.msra.mxu0 %v708
      %756 = vmatprep.subr.bf16.mxu0 0
      %757 = vmatpush2.bf16.msra.mxu0 0
      %758 = vmatprep.subr.bf16.mxu0 0
      %759 = vmatpush2.bf16.msra.mxu0 0
      %760 = vmatprep.subr.bf16.mxu0 0
      %761 = vmatpush2.bf16.msra.mxu0 0
      %762 = vmatprep.subr.bf16.mxu0 0
      %763 = vmatpush2.bf16.msra.mxu0 0
      %764 = vmatprep.subr.bf16.mxu0 0
      %765 = vmatpush2.bf16.msra.mxu0 0
      %766 = vmatprep.subr.bf16.mxu0 0
      %767 = vmatpush2.bf16.msra.mxu0 0
      %768 = vmatprep.subr.bf16.mxu0 0
      %769 = vmatpush2.bf16.msra.mxu0 0
      %770 = vmatprep.subr.bf16.mxu0 0
      %771 = vmatpush2.bf16.msra.mxu0 0
      %772 = vmatprep.mubr.bf16.mxu0 0
      %773 = vmatmul.mubr.bf16.gmra.mxu0 %v642
      %v774 = vpop.f32.mrf.mxu0
      %v775 = vadd.f32 0.0, %v774
      %v776 = vpop.f32.mrf.mxu0
      %v777 = vadd.f32 0.0, %v776
      %v778 = vpop.f32.mrf.mxu0
      %v779 = vadd.f32 0.0, %v778
      %v780 = vpop.f32.mrf.mxu0
      %v781 = vadd.f32 0.0, %v780
      %782 = vmatprep.mubr.bf16.mxu0 0
      %783 = vmatmul.mubr.bf16.gmra.mxu0 %v643
      %v784 = vpop.f32.mrf.mxu0
      %v785 = vadd.f32 0.0, %v784
      %v786 = vpop.f32.mrf.mxu0
      %v787 = vadd.f32 0.0, %v786
      %v788 = vpop.f32.mrf.mxu0
      %v789 = vadd.f32 0.0, %v788
      %v790 = vpop.f32.mrf.mxu0
      %v791 = vadd.f32 0.0, %v790
      %792 = vdwg.mxu0
      %v793 = vmul.f32 %v234, %v775
      %v794 = vmul.f32 %v235, %v777
      %v795 = vmul.f32 %v236, %v779
      %v796 = vmul.f32 %v237, %v781
      %v797 = vmul.f32 %v238, %v785
      %v798 = vmul.f32 %v239, %v787
      %v799 = vmul.f32 %v240, %v789
      %v800 = vmul.f32 %v241, %v791
      %801 = vst [vmem:[%s231] sm:$0xff] %v793
      %802 = vst [vmem:[%s231 + $0x8] sm:$0xff] %v794
      %803 = vst [vmem:[%s231 + $0x10] sm:$0xff] %v795
      %804 = vst [vmem:[%s231 + $0x18] sm:$0xff] %v796
      %805 = vst [vmem:[%s231 + $0x20] sm:$0xff] %v797
      %806 = vst [vmem:[%s231 + $0x28] sm:$0xff] %v798
      %807 = vst [vmem:[%s231 + $0x30] sm:$0xff] %v799
      %808 = vst [vmem:[%s231 + $0x38] sm:$0xff] %v800
      %s809 = smul.u32 4, %s16
      %p810 = scmp.lt.s32.totalorder %s809, 7
      %s811 = scalar_select %p810, %s809, 7
      %s812 = smul.addr %s811, 2
      %s813 = smul.addr %s812, 8
      %s814 = scalar_lea.vmem %s5, %s813
      // Predicated region
      $region41: #{locality_channel_attention.1} parent=39 // pred_check
        %p815 = pneg %p144
      $region42: #{locality_channel_attention.1} parent=39 // pred_check_branch
        %817 = sbr.rel (%p815) target = $region44
      $region43: #{locality_channel_attention.1} parent=39 // pred_region
        %s818 = smul.u32 4, %s16
      $region44: #{locality_channel_attention.1} parent=39 // pred_fallthru
        _
    $region40: #{locality_channel_attention.1} parent=5 // pred_fallthru
      _
    %p819 = scmp.le.s32.totalorder 2, %s11
    // Predicated region
    $region45: #{locality_channel_attention.1} parent=5 // pred_check
      %p820 = pneg %p819
    $region46: #{locality_channel_attention.1} parent=5 // pred_check_branch
      %822 = sbr.rel (%p820) target = $region48
    $region47: #{locality_channel_attention.1} parent=5 // pred_region
      %s823 = ssub.s32 %s11, 2
      // Predicated region
      $region49: #{locality_channel_attention.1} parent=47 // pred_check
        %p824 = pneg %p150
      $region50: #{locality_channel_attention.1} parent=47 // pred_check_branch
        %826 = sbr.rel (%p824) target = $region52
      $region51: #{locality_channel_attention.1} parent=47 // pred_region
        %s827 = smul.u32 4, %s17
        %p828 = scmp.lt.s32.totalorder %s827, 7
        %s829 = scalar_select %p828, %s827, 7
        %s830 = smul.addr %s829, 2
        %s831 = smul.addr %s830, 8
        %s832 = scalar_lea.vmem %s5, %s831
      $region52: #{locality_channel_attention.1} parent=47 // pred_fallthru
        _
    $region48: #{locality_channel_attention.1} parent=5 // pred_fallthru
      _
  $region6: #{locality_channel_attention.1} parent=0 // loop_footer
    %s15 = sadd.s32 1, %s11
  $region7: #{locality_channel_attention.1} parent=0 // loop_footer_branch
    %10 = sbr.rel target = $region3
  $region8: #{locality_channel_attention.1} parent=0 // loop_exit
    _

</llo_original>
